<compile_context>
chip_gen: v6e
topology: v6e:2x2x1
jax: 0.10.0
libtpu: 0.0.40
codegen_flags: <defaults>
</compile_context>

<pallas_src>
import functools

import jax
import jax.numpy as jnp
from jax import lax
from jax.experimental import pallas as pl
from jax.experimental.pallas import tpu as pltpu

EPS = 1e-5      # nn.BatchNorm1d default eps
DROP_P = 0.1    # nn.Dropout p


# ----------------------------------------------------------------------------- helpers
def _round_up(a, m):
    return (a + m - 1) // m * m


def _device_config():
    """Per-generation tile / VMEM defaults and stats-pass partial count (megacore)."""
    try:
        kind = jax.devices()[0].device_kind.lower()
    except Exception:
        kind = ""
    if "v7" in kind:
        # v7x: 64 MiB physical VMEM, 2 TensorCores per chip.
        return {"block_cols": 4096, "vmem_limit": 32 * 1024 * 1024, "stat_partials": 2}
    # v6e / v5e: 128 MiB physical VMEM, single TensorCore (explicit limit matters on v5e,
    # whose default scoped VMEM is only 16 MiB).
    return {"block_cols": 8192, "vmem_limit": 64 * 1024 * 1024, "stat_partials": 1}


def _hidden1(x, w1_ref, b1_ref):
    """h1 = relu(W1 @ x + b1), activations feature-major (64, block_cols)."""
    h = jnp.dot(w1_ref[...], x, preferred_element_type=jnp.float32) + b1_ref[...]
    return jnp.maximum(h, 0.0)


def _col_validity(block_cols, tiles_per_part, valid_cols):
    """(1, block_cols) mask of in-batch columns for the current grid point."""
    t = pl.program_id(0) * tiles_per_part + pl.program_id(1)
    cols = t * block_cols + lax.broadcasted_iota(jnp.int32, (1, block_cols), 1)
    return cols < valid_cols


# ----------------------------------------------------------------------------- kernels
def _stats1_kernel(x_ref, w1_ref, b1_ref, stats_ref, *,
                   valid_cols, block_cols, tiles_per_part):
    """Accumulate per-feature [sum | sum_sq] (64,2) of h1 = relu(W1 x + b1)."""
    @pl.when(pl.program_id(1) == 0)
    def _():
        stats_ref[...] = jnp.zeros(stats_ref.shape, stats_ref.dtype)

    h1 = _hidden1(x_ref[...], w1_ref, b1_ref)
    valid = _col_validity(block_cols, tiles_per_part, valid_cols)
    h1 = jnp.where(valid, h1, 0.0)
    stats_ref[:, 0:1] += jnp.sum(h1, axis=1, keepdims=True)
    stats_ref[:, 1:2] += jnp.sum(h1 * h1, axis=1, keepdims=True)


def _stats2_kernel(x_ref, w1_ref, b1_ref, w2_ref, b2_ref, stats_ref, *,
                   valid_cols, block_cols, tiles_per_part):
    """Accumulate stats of h2 = relu(W2f h1 + b2f); BN1 already folded into W2f/b2f."""
    @pl.when(pl.program_id(1) == 0)
    def _():
        stats_ref[...] = jnp.zeros(stats_ref.shape, stats_ref.dtype)

    h1 = _hidden1(x_ref[...], w1_ref, b1_ref)
    h2 = jnp.dot(w2_ref[...], h1, preferred_element_type=jnp.float32) + b2_ref[...]
    h2 = jnp.maximum(h2, 0.0)
    valid = _col_validity(block_cols, tiles_per_part, valid_cols)
    h2 = jnp.where(valid, h2, 0.0)
    stats_ref[:, 0:1] += jnp.sum(h2, axis=1, keepdims=True)
    stats_ref[:, 1:2] += jnp.sum(h2 * h2, axis=1, keepdims=True)


def _final_kernel(x_ref, mask_ref, w1_ref, b1_ref, w2_ref, b2_ref, post_ref, out_ref):
    """Recompute h1/h2, apply BN2 (scale/shift with 1/(1-p) folded), dropout mask, and
    the 1-wide output layer; emit a lane-dense (1, block_cols) slab."""
    h1 = _hidden1(x_ref[...], w1_ref, b1_ref)
    h2 = jnp.dot(w2_ref[...], h1, preferred_element_type=jnp.float32) + b2_ref[...]
    h2 = jnp.maximum(h2, 0.0)

    post = post_ref[...]                     # (64, 3): [s2/(1-p) | shift2/(1-p) | w3]
    s2 = post[:, 0:1]
    shift2 = post[:, 1:2]
    w3c = post[:, 2:3]

    hd = (h2 * s2 + shift2) * mask_ref[...].astype(jnp.float32)
    # 1-wide output layer as VPU multiply + sublane reduce (no tiny-N MXU matmul);
    # b3 is added in the wrapper.
    out_ref[...] = jnp.sum(hd * w3c, axis=0, keepdims=True)


# ----------------------------------------------------------------------------- wrapper
def binary_classifier_forward(x, params, keep_mask, *, block_cols=None,
                              vmem_limit_bytes=None, stat_partials=None):
    """Training-mode forward of BinaryClassifier.

    x:         (B, 8) float — module-native layout (transposed internally).
    params:    dict in PyTorch layout (see init_params).
    keep_mask: (64, B) bool/int dropout *keep* mask, feature-major (kernel layout).
    Returns (B, 1) float32.
    """
    B, F = x.shape
    assert F == 8
    assert keep_mask.shape == (64, B)

    cfg = _device_config()
    if block_cols is None:
        block_cols = cfg["block_cols"]
    if vmem_limit_bytes is None:
        vmem_limit_bytes = cfg["vmem_limit"]
    if stat_partials is None:
        stat_partials = cfg["stat_partials"]

    block_cols = max(128, min(_round_up(B, 128), _round_up(block_cols, 128)))
    b_pad = _round_up(B, block_cols * stat_partials)
    n_tiles = b_pad // block_cols
    tiles_per_part = n_tiles // stat_partials

    xt = jnp.asarray(x, jnp.float32).T                              # (8, B) feature-major
    if b_pad != B:
        xt = jnp.pad(xt, ((0, 0), (0, b_pad - B)))
    mask = jnp.asarray(keep_mask, jnp.int8)                         # (64, B) int8
    if b_pad != B:
        mask = jnp.pad(mask, ((0, 0), (0, b_pad - B)))

    w1 = jnp.asarray(params["w1"], jnp.float32)                     # (64, 8)
    b1 = jnp.asarray(params["b1"], jnp.float32).reshape(64, 1)
    w2 = jnp.asarray(params["w2"], jnp.float32)                     # (64, 64)
    b2 = jnp.asarray(params["b2"], jnp.float32).reshape(64, 1)
    w3 = jnp.asarray(params["w3"], jnp.float32).reshape(64, 1)
    b3 = jnp.asarray(params["b3"], jnp.float32).reshape(1, 1)
    g1 = jnp.asarray(params["g1"], jnp.float32).reshape(64, 1)
    be1 = jnp.asarray(params["be1"], jnp.float32).reshape(64, 1)
    g2 = jnp.asarray(params["g2"], jnp.float32).reshape(64, 1)
    be2 = jnp.asarray(params["be2"], jnp.float32).reshape(64, 1)

    # ---- specs for the two stats (reduction) passes: grid (partials, tiles/partial) ----
    const2 = lambda c, i: (0, 0)
    x_spec2 = pl.BlockSpec((8, block_cols), lambda c, i: (0, c * tiles_per_part + i))
    w1_spec2 = pl.BlockSpec((64, 8), const2)
    vec_spec2 = pl.BlockSpec((64, 1), const2)
    w2_spec2 = pl.BlockSpec((64, 64), const2)
    stats_spec = pl.BlockSpec((None, 64, 2), lambda c, i: (c, 0, 0))
    stats_shape = jax.ShapeDtypeStruct((stat_partials, 64, 2), jnp.float32)

    stats_cp = pltpu.CompilerParams(
        dimension_semantics=("parallel", "arbitrary"),
        vmem_limit_bytes=vmem_limit_bytes)
    final_cp = pltpu.CompilerParams(
        dimension_semantics=("parallel",),
        vmem_limit_bytes=vmem_limit_bytes)

    # ---- pass 1: full-batch stats of h1 = relu(W1 x + b1) ------------------------------
    stats1 = pl.pallas_call(
        functools.partial(_stats1_kernel, valid_cols=B, block_cols=block_cols,
                          tiles_per_part=tiles_per_part),
        out_shape=stats_shape,
        grid=(stat_partials, tiles_per_part),
        in_specs=[x_spec2, w1_spec2, vec_spec2],
        out_specs=stats_spec,
        compiler_params=stats_cp,
    )(xt, w1, b1)
    stats1 = jnp.sum(stats1, axis=0)                                # (64, 2)

    mu1 = stats1[:, 0:1] / B
    var1 = jnp.maximum(stats1[:, 1:2] / B - mu1 * mu1, 0.0)         # biased batch var
    s1 = g1 * lax.rsqrt(var1 + EPS)
    # Fold BN1 into layer_2:  W2 @ (s1*h1 + (be1 - mu1*s1)) + b2
    w2f = w2 * s1.reshape(1, 64)
    b2f = b2 + w2 @ (be1 - mu1 * s1)

    # ---- pass 2: full-batch stats of h2 = relu(W2f h1 + b2f) ---------------------------
    stats2 = pl.pallas_call(
        functools.partial(_stats2_kernel, valid_cols=B, block_cols=block_cols,
                          tiles_per_part=tiles_per_part),
        out_shape=stats_shape,
        grid=(stat_partials, tiles_per_part),
        in_specs=[x_spec2, w1_spec2, vec_spec2, w2_spec2, vec_spec2],
        out_specs=stats_spec,
        compiler_params=stats_cp,
    )(xt, w1, b1, w2f, b2f)
    stats2 = jnp.sum(stats2, axis=0)

    mu2 = stats2[:, 0:1] / B
    var2 = jnp.maximum(stats2[:, 1:2] / B - mu2 * mu2, 0.0)
    s2 = g2 * lax.rsqrt(var2 + EPS)
    shift2 = be2 - mu2 * s2
    inv_keep = 1.0 / (1.0 - DROP_P)
    # 1/(1-p) dropout scale folded into the BN2 affine; w3 packed alongside.
    post = jnp.concatenate([s2 * inv_keep, shift2 * inv_keep, w3], axis=1)   # (64, 3)

    # ---- pass 3: BN2 + dropout + output, batch-parallel, lane-dense output -------------
    const1 = lambda i: (0, 0)
    out = pl.pallas_call(
        _final_kernel,
        out_shape=jax.ShapeDtypeStruct((1, b_pad), jnp.float32),
        grid=(n_tiles,),
        in_specs=[pl.BlockSpec((8, block_cols), lambda i: (0, i)),
                  pl.BlockSpec((64, block_cols), lambda i: (0, i)),
                  pl.BlockSpec((64, 8), const1),
                  pl.BlockSpec((64, 1), const1),
                  pl.BlockSpec((64, 64), const1),
                  pl.BlockSpec((64, 1), const1),
                  pl.BlockSpec((64, 3), const1)],
        out_specs=pl.BlockSpec((1, block_cols), lambda i: (0, i)),
        compiler_params=final_cp,
    )(xt, mask, w1, b1, w2f, b2f, post)

    return out[0, :B].reshape(B, 1) + b3


# ----------------------------------------------------------------------------- reference
def reference_forward(x, params, keep_mask):
    """Pure-JAX reference (training-mode BN, same dropout keep mask)."""
    w1, b1 = params["w1"], params["b1"]
    w2, b2 = params["w2"], params["b2"]
    w3, b3 = params["w3"], params["b3"]
    g1, be1, g2, be2 = params["g1"], params["be1"], params["g2"], params["be2"]

    h = jnp.maximum(x @ w1.T + b1, 0.0)
    mu = jnp.mean(h, axis=0)
    var = jnp.mean((h - mu) ** 2, axis=0)
    h = (h - mu) * lax.rsqrt(var + EPS) * g1 + be1

    h = jnp.maximum(h @ w2.T + b2, 0.0)
    mu = jnp.mean(h, axis=0)
    var = jnp.mean((h - mu) ** 2, axis=0)
    h = (h - mu) * lax.rsqrt(var + EPS) * g2 + be2

    h = h * keep_mask.T.astype(jnp.float32) / (1.0 - DROP_P)
    return h @ w3.T + b3


def init_params(key):
    """PyTorch-layout params: Linear weight (out,in), uniform(-1/sqrt(fan_in), ...);
    BatchNorm gamma=1, beta=0."""
    ks = jax.random.split(key, 6)

    def lin(kw, kb, fan_in, fan_out):
        bound = 1.0 / jnp.sqrt(fan_in)
        w = jax.random.uniform(kw, (fan_out, fan_in), jnp.float32, -bound, bound)
        b = jax.random.uniform(kb, (fan_out,), jnp.float32, -bound, bound)
        return w, b

    w1, b1 = lin(ks[0], ks[1], 8, 64)
    w2, b2 = lin(ks[2], ks[3], 64, 64)
    w3, b3 = lin(ks[4], ks[5], 64, 1)
    return {
        "w1": w1, "b1": b1,
        "g1": jnp.ones((64,), jnp.float32), "be1": jnp.zeros((64,), jnp.float32),
        "w2": w2, "b2": b2,
        "g2": jnp.ones((64,), jnp.float32), "be2": jnp.zeros((64,), jnp.float32),
        "w3": w3, "b3": b3,
    }


if __name__ == "__main__":
    key = jax.random.PRNGKey(0)
    kx, kp, kd = jax.random.split(key, 3)

    B = 200                                    # not a multiple of the tile: exercises masking
    x = jax.random.normal(kx, (B, 8), dtype=jnp.float32)
    params = init_params(kp)
    # Dropout keep mask in kernel-native (features, batch) layout.
    keep_mask = jax.random.bernoulli(kd, 1.0 - DROP_P, (64, B))

    # Small block_cols so the test exercises multi-tile accumulation + padded-column masking.
    out = binary_classifier_forward(x, params, keep_mask, block_cols=128)
    jax.block_until_ready(out)
    assert out.shape == (B, 1) and out.dtype == jnp.float32

    ref = reference_forward(x, params, keep_mask)
    max_err = float(jnp.max(jnp.abs(out - ref)))
    assert max_err < 5e-2, max_err

    print("KERNEL_OK")
</pallas_src>

<mosaic_0001>
module attributes {stable_mosaic.version = 11 : i64} {
  func.func @_stats1_kernel(%arg0: i32, %arg1: i32, %arg2: memref<8x128xf32, #tpu.memory_space<vmem>>, %arg3: memref<64x8xf32, #tpu.memory_space<vmem>>, %arg4: memref<64x1xf32, #tpu.memory_space<vmem>>, %arg5: memref<1x64x2xf32, #tpu.memory_space<vmem>>) attributes {dimension_semantics = [#tpu.dimension_semantics<parallel>, #tpu.dimension_semantics<arbitrary>], iteration_bounds = array<i64: 1, 2>, scalar_prefetch = 0 : i64, scratch_operands = 0 : i64, tpu.core_type = #tpu.core_type<tc>, window_params = [{transform_indices = @transform_0, window_bounds = array<i64: 8, 128>}, {pipeline_mode = #tpu.pipeline_mode<synchronous>, transform_indices = @transform_1, window_bounds = array<i64: 64, 8>}, {pipeline_mode = #tpu.pipeline_mode<synchronous>, transform_indices = @transform_2, window_bounds = array<i64: 64, 1>}, {transform_indices = @transform_3, window_bounds = array<i64: 1, 64, 2>}]} {
    %c0_i32 = arith.constant 0 : i32
    %0 = arith.cmpi eq, %arg1, %c0_i32 : i32
    %1 = arith.extui %0 : i1 to i32
    %c0_i32_0 = arith.constant 0 : i32
    %2 = arith.cmpi ne, %1, %c0_i32_0 : i32
    scf.if %2 {
      %cst_21 = arith.constant 0.000000e+00 : f32
      %40 = vector.broadcast %cst_21 : f32 to vector<64x2xf32>
      %c0_22 = arith.constant 0 : index
      %c0_23 = arith.constant 0 : index
      %c0_24 = arith.constant 0 : index
      %41 = vector.load %arg5[%c0_22, %c0_23, %c0_24] : memref<1x64x2xf32, #tpu.memory_space<vmem>>, vector<1x64x2xf32>
      %42 = vector.shape_cast %41 : vector<1x64x2xf32> to vector<64x2xf32>
      %43 = vector.shape_cast %40 : vector<64x2xf32> to vector<1x64x2xf32>
      tpu.vector_store %arg5[%c0_22, %c0_23, %c0_24], %43 {strides = array<i32>} : memref<1x64x2xf32, #tpu.memory_space<vmem>>, vector<1x64x2xf32>,
    } else {
    }
    %c0 = arith.constant 0 : index
    %c0_1 = arith.constant 0 : index
    %3 = vector.load %arg2[%c0, %c0_1] : memref<8x128xf32, #tpu.memory_space<vmem>>, vector<8x128xf32>
    %c0_2 = arith.constant 0 : index
    %c0_3 = arith.constant 0 : index
    %4 = vector.load %arg3[%c0_2, %c0_3] : memref<64x8xf32, #tpu.memory_space<vmem>>, vector<64x8xf32>
    %cst = arith.constant dense<0.000000e+00> : vector<64x128xf32>
    %5 = tpu.matmul %4, %3, %cst {dimension_numbers = #tpu.dot_dimension_numbers<[1], [0], [0], [1], [0, 0, 1, 1], [], []>} : vector<64x8xf32>, vector<8x128xf32>, vector<64x128xf32> -> vector<64x128xf32>
    %c0_4 = arith.constant 0 : index
    %c0_5 = arith.constant 0 : index
    %6 = vector.load %arg4[%c0_4, %c0_5] : memref<64x1xf32, #tpu.memory_space<vmem>>, vector<64x1xf32>
    %7 = vector.broadcast %6 : vector<64x1xf32> to vector<64x128xf32>
    %8 = arith.addf %5, %7 : vector<64x128xf32>
    %cst_6 = arith.constant 0.000000e+00 : f32
    %9 = vector.broadcast %cst_6 : f32 to vector<64x128xf32>
    %10 = arith.maximumf %8, %9 : vector<64x128xf32>
    %c2_i32 = arith.constant 2 : i32
    %11 = arith.muli %arg0, %c2_i32 : i32
    %12 = arith.addi %11, %arg1 : i32
    %c128_i32 = arith.constant 128 : i32
    %13 = arith.muli %12, %c128_i32 : i32
    %14 = tpu.iota {dimensions = array<i32: 1>} : vector<1x128xi32>
    %15 = vector.broadcast %13 : i32 to vector<1x128xi32>
    %16 = arith.addi %15, %14 : vector<1x128xi32>
    %c200_i32 = arith.constant 200 : i32
    %17 = vector.broadcast %c200_i32 : i32 to vector<1x128xi32>
    %18 = arith.cmpi slt, %16, %17 : vector<1x128xi32>
    %cst_7 = arith.constant 0.000000e+00 : f32
    %19 = vector.shape_cast %18 : vector<1x128xi1> to vector<1x128xi1>
    %20 = vector.broadcast %19 : vector<1x128xi1> to vector<64x128xi1>
    %21 = vector.broadcast %cst_7 : f32 to vector<64x128xf32>
    %22 = arith.select %20, %10, %21 : vector<64x128xi1>, vector<64x128xf32>
    %c0_8 = arith.constant 0 : index
    %c0_9 = arith.constant 0 : index
    %c0_10 = arith.constant 0 : index
    %23 = vector.load %arg5[%c0_8, %c0_9, %c0_10] : memref<1x64x2xf32, #tpu.memory_space<vmem>>, vector<1x64x1xf32>
    %24 = vector.shape_cast %23 : vector<1x64x1xf32> to vector<64x1xf32>
    %cst_11 = arith.constant dense<0.000000e+00> : vector<64xf32>
    %25 = vector.multi_reduction <add>, %22, %cst_11 [1] : vector<64x128xf32> to vector<64xf32>
    %26 = vector.shape_cast %25 : vector<64xf32> to vector<64x1xf32>
    %27 = arith.addf %24, %26 : vector<64x1xf32>
    %c0_12 = arith.constant 0 : index
    %c0_13 = arith.constant 0 : index
    %c0_14 = arith.constant 0 : index
    %28 = vector.load %arg5[%c0_12, %c0_13, %c0_14] : memref<1x64x2xf32, #tpu.memory_space<vmem>>, vector<1x64x1xf32>
    %29 = vector.shape_cast %28 : vector<1x64x1xf32> to vector<64x1xf32>
    %30 = vector.shape_cast %27 : vector<64x1xf32> to vector<1x64x1xf32>
    tpu.vector_store %arg5[%c0_12, %c0_13, %c0_14], %30 {strides = array<i32>} : memref<1x64x2xf32, #tpu.memory_space<vmem>>, vector<1x64x1xf32>,
    %c0_15 = arith.constant 0 : index
    %c0_16 = arith.constant 0 : index
    %c1 = arith.constant 1 : index
    %31 = vector.load %arg5[%c0_15, %c0_16, %c1] : memref<1x64x2xf32, #tpu.memory_space<vmem>>, vector<1x64x1xf32>
    %32 = vector.shape_cast %31 : vector<1x64x1xf32> to vector<64x1xf32>
    %33 = arith.mulf %22, %22 : vector<64x128xf32>
    %cst_17 = arith.constant dense<0.000000e+00> : vector<64xf32>
    %34 = vector.multi_reduction <add>, %33, %cst_17 [1] : vector<64x128xf32> to vector<64xf32>
    %35 = vector.shape_cast %34 : vector<64xf32> to vector<64x1xf32>
    %36 = arith.addf %32, %35 : vector<64x1xf32>
    %c0_18 = arith.constant 0 : index
    %c0_19 = arith.constant 0 : index
    %c1_20 = arith.constant 1 : index
    %37 = vector.load %arg5[%c0_18, %c0_19, %c1_20] : memref<1x64x2xf32, #tpu.memory_space<vmem>>, vector<1x64x1xf32>
    %38 = vector.shape_cast %37 : vector<1x64x1xf32> to vector<64x1xf32>
    %39 = vector.shape_cast %36 : vector<64x1xf32> to vector<1x64x1xf32>
    tpu.vector_store %arg5[%c0_18, %c0_19, %c1_20], %39 {strides = array<i32>} : memref<1x64x2xf32, #tpu.memory_space<vmem>>, vector<1x64x1xf32>,
    return
  }
  func.func @transform_0(%arg0: i32, %arg1: i32) -> (i32, i32) {
    %c2_i32 = arith.constant 2 : i32
    %0 = arith.muli %arg0, %c2_i32 : i32
    %1 = arith.addi %0, %arg1 : i32
    %c0_i32 = arith.constant 0 : i32
    %c0_i32_0 = arith.constant 0 : i32
    return %c0_i32, %1 : i32, i32
  }
  func.func @transform_1(%arg0: i32, %arg1: i32) -> (i32, i32) {
    %c0_i32 = arith.constant 0 : i32
    %c0_i32_0 = arith.constant 0 : i32
    %c0_i32_1 = arith.constant 0 : i32
    return %c0_i32, %c0_i32_0 : i32, i32
  }
  func.func @transform_2(%arg0: i32, %arg1: i32) -> (i32, i32) {
    %c0_i32 = arith.constant 0 : i32
    %c0_i32_0 = arith.constant 0 : i32
    %c0_i32_1 = arith.constant 0 : i32
    return %c0_i32, %c0_i32_0 : i32, i32
  }
  func.func @transform_3(%arg0: i32, %arg1: i32) -> (i32, i32, i32) {
    %c0_i32 = arith.constant 0 : i32
    %c0_i32_0 = arith.constant 0 : i32
    %c0_i32_1 = arith.constant 0 : i32
    return %arg0, %c0_i32, %c0_i32_0 : i32, i32, i32
  }
}

</mosaic_0001>

<llo_original>
// kernel: tpu_custom_call.1
$region0: #{tpu_custom_call.1}
  #allocation0 [shape = 'u32[]', space=smem, size = 0x4, offset = 0x4, fixed_abs, tag = 'smem constant byte address 0x4 - core index']
  #allocation1 [shape = 'u32[144,128]{1,0:T(1,128)}', space=vmem, size = 0x12000, scoped, tag = 'internal scratch']
  %s0 = inlined_call_operand.vmem [shape: f32[8,256], index: 0, kind: input, shape index: {}]
  %s1 = inlined_call_operand.vmem [shape: f32[64,8], index: 1, kind: input, shape index: {}]
  %s2 = inlined_call_operand.vmem [shape: f32[64,1], index: 2, kind: input, shape index: {}]
  %s3 = inlined_call_operand.vmem [shape: f32[1,64,2], index: 3, kind: output, shape index: {}]
  %s4 = sld [smem:[#allocation0]]
  $region49: #{tpu_custom_call.1} parent=0
    _
  %s6 = ssub.s32 1, %s4
  %s7 = scalar_select 0, %s6, %s4
  loop: start=0, step=1, limit=4
  $region2: #{tpu_custom_call.1} parent=0 // loop_pre_header
    _
  $region3: #{tpu_custom_call.1} parent=0 // loop_header
    %s9 = sphi 0, %s13
    %p10 = scmp.ge.s32.totalorder %s9, 4
    %s16 = sphi 0, %s28
    %s17 = sphi 0, %s24
    %s18 = sphi 0, %s16
    %s19 = sphi 0, %s17
    %s20 = sphi 0, %s18
    %s21 = sphi 0, %s19
    %s35 = sphi 0, %s37
    %s38 = sphi 0, %s35
    %s39 = sphi 0, %s38
    %s55 = sphi 0, %s39
    %s59 = sphi 0, %s59
    %s61 = sphi 0, %s59
    %s62 = sphi 0, %s61
    %s76 = sphi 0, %s62
    %s80 = sphi 0, %s80
    %s82 = sphi 0, %s80
    %s83 = sphi 0, %s82
    %s97 = sphi 0, %s83
    %s103 = sphi 0, %s105
    %s106 = sphi 0, %s103
    %s107 = sphi 0, %s106
    %s123 = sphi 0, %s107
  $region4: #{tpu_custom_call.1} parent=0 // loop_header_branch
    %12 = sbr.rel (%p10) target = $region8
  $region5: #{tpu_custom_call.1} parent=0 // loop_body
    %s14 = ssub.s32 %s9, 1
    %s15 = ssub.s32 %s9, 2
    %s22 = sadd.s32 1, %s17
    %p23 = scmp.ge.s32.totalorder %s22, 2
    %s24 = scalar_select %p23, 0, %s22
    %s25 = sadd.s32 1, %s16
    %s26 = scalar_select %p23, %s25, %s16
    %p27 = scmp.ge.s32.totalorder %s26, 1
    %s28 = scalar_select %p27, 0, %s26
    %s29 = smul.u32 %s16, 2
    %s30 = sadd.s32 %s29, %s17
    %s31 = smul.u32 %s28, 2
    %s32 = sadd.s32 %s31, %s24
    %s33 = ssub.s32 %s30, %s32
    %p34 = scmp.eq.s32.totalorder %s33, 0
    %s36 = sadd.s32 %s35, 1
    %s37 = scalar_select %p34, %s35, %s36
    %p40 = pneg %p34
    %p41 = scmp.eq.s32.totalorder %s9, 1
    %p42 = por %p40, %p41
    %p43 = scmp.ne.s32.totalorder %s35, %s38
    %p44 = scmp.eq.s32.totalorder %s9, 0
    %p45 = por %p43, %p44
    %p46 = scmp.ne.s32.totalorder %s35, %s38
    %p47 = scmp.eq.s32.totalorder %s14, 1
    %p48 = por %p46, %p47
    %p49 = scmp.ne.s32.totalorder %s38, %s39
    %p50 = scmp.eq.s32.totalorder %s14, 0
    %p51 = por %p49, %p50
    %p52 = scmp.ne.s32.totalorder %s38, %s39
    %p53 = scmp.eq.s32.totalorder %s15, 1
    %p54 = por %p52, %p53
    %p56 = scmp.ne.s32.totalorder %s39, %s55
    %p57 = scmp.eq.s32.totalorder %s15, 0
    %p58 = por %p56, %p57
    %s60 = sadd.s32 %s59, 1
    %p63 = scmp.eq.s32.totalorder %s9, 1
    %p64 = scmp.ne.s32.totalorder %s59, %s61
    %p65 = scmp.eq.s32.totalorder %s9, 0
    %p66 = por %p64, %p65
    %p67 = scmp.ne.s32.totalorder %s59, %s61
    %p68 = scmp.eq.s32.totalorder %s14, 1
    %p69 = por %p67, %p68
    %p70 = scmp.ne.s32.totalorder %s61, %s62
    %p71 = scmp.eq.s32.totalorder %s14, 0
    %p72 = por %p70, %p71
    %p73 = scmp.ne.s32.totalorder %s61, %s62
    %p74 = scmp.eq.s32.totalorder %s15, 1
    %p75 = por %p73, %p74
    %p77 = scmp.ne.s32.totalorder %s62, %s76
    %p78 = scmp.eq.s32.totalorder %s15, 0
    %p79 = por %p77, %p78
    %s81 = sadd.s32 %s80, 1
    %p84 = scmp.eq.s32.totalorder %s9, 1
    %p85 = scmp.ne.s32.totalorder %s80, %s82
    %p86 = scmp.eq.s32.totalorder %s9, 0
    %p87 = por %p85, %p86
    %p88 = scmp.ne.s32.totalorder %s80, %s82
    %p89 = scmp.eq.s32.totalorder %s14, 1
    %p90 = por %p88, %p89
    %p91 = scmp.ne.s32.totalorder %s82, %s83
    %p92 = scmp.eq.s32.totalorder %s14, 0
    %p93 = por %p91, %p92
    %p94 = scmp.ne.s32.totalorder %s82, %s83
    %p95 = scmp.eq.s32.totalorder %s15, 1
    %p96 = por %p94, %p95
    %p98 = scmp.ne.s32.totalorder %s83, %s97
    %p99 = scmp.eq.s32.totalorder %s15, 0
    %p100 = por %p98, %p99
    %s101 = ssub.s32 %s16, %s28
    %p102 = scmp.eq.s32.totalorder %s101, 0
    %s104 = sadd.s32 %s103, 1
    %s105 = scalar_select %p102, %s103, %s104
    %p108 = pneg %p102
    %p109 = scmp.eq.s32.totalorder %s9, 1
    %p110 = por %p108, %p109
    %p111 = scmp.ne.s32.totalorder %s103, %s106
    %p112 = scmp.eq.s32.totalorder %s9, 0
    %p113 = por %p111, %p112
    %p114 = scmp.ne.s32.totalorder %s103, %s106
    %p115 = scmp.eq.s32.totalorder %s14, 1
    %p116 = por %p114, %p115
    %p117 = scmp.ne.s32.totalorder %s106, %s107
    %p118 = scmp.eq.s32.totalorder %s14, 0
    %p119 = por %p117, %p118
    %p120 = scmp.ne.s32.totalorder %s106, %s107
    %p121 = scmp.eq.s32.totalorder %s15, 1
    %p122 = por %p120, %p121
    %p124 = scmp.ne.s32.totalorder %s107, %s123
    %p125 = scmp.eq.s32.totalorder %s15, 0
    %p126 = por %p124, %p125
    %p127 = scmp.le.s32.totalorder 1, %s9
    %p128 = scmp.lt.s32.totalorder %s9, 3
    %p129 = pnand %p127, %p128
    %p130 = pneg %p129
    // Predicated region
    $region9: #{tpu_custom_call.1} parent=5 // pred_check
      _
    $region10: #{tpu_custom_call.1} parent=5 // pred_check_branch
      %132 = sbr.rel (%p129) target = $region12
    $region11: #{tpu_custom_call.1} parent=5 // pred_region
      %s133 = ssub.s32 %s9, 1
      // Predicated region
      $region13: #{tpu_custom_call.1} parent=11 // pred_check
        %p134 = pneg %p72
      $region14: #{tpu_custom_call.1} parent=11 // pred_check_branch
        %136 = sbr.rel (%p134) target = $region16
      $region15: #{tpu_custom_call.1} parent=11 // pred_region
        _
      $region16: #{tpu_custom_call.1} parent=11 // pred_fallthru
        _
      // Predicated region
      $region17: #{tpu_custom_call.1} parent=11 // pred_check
        %p137 = pneg %p93
      $region18: #{tpu_custom_call.1} parent=11 // pred_check_branch
        %139 = sbr.rel (%p137) target = $region20
      $region19: #{tpu_custom_call.1} parent=11 // pred_region
        _
      $region20: #{tpu_custom_call.1} parent=11 // pred_fallthru
        _
    $region12: #{tpu_custom_call.1} parent=5 // pred_fallthru
      _
    %p140 = scmp.lt.s32.totalorder %s9, 2
    // Predicated region
    $region21: #{tpu_custom_call.1} parent=5 // pred_check
      %p141 = pneg %p140
    $region22: #{tpu_custom_call.1} parent=5 // pred_check_branch
      %143 = sbr.rel (%p141) target = $region24
    $region23: #{tpu_custom_call.1} parent=5 // pred_region
      // Predicated region
      $region25: #{tpu_custom_call.1} parent=23 // pred_check
        %p144 = pneg %p45
      $region26: #{tpu_custom_call.1} parent=23 // pred_check_branch
        %146 = sbr.rel (%p144) target = $region28
      $region27: #{tpu_custom_call.1} parent=23 // pred_region
        %s147 = smul.u32 %s16, 2
        %s148 = sadd.s32 %s147, %s17
        %p149 = scmp.lt.s32.totalorder %s148, 1
        %s150 = scalar_select %p149, %s148, 1
        %s151 = smul.addr %s150, 8
        %s152 = scalar_lea.vmem %s0, %s151
        %s153 = smul.u32 %s16, 2
        %s154 = sadd.s32 %s153, %s17
      $region28: #{tpu_custom_call.1} parent=23 // pred_fallthru
        _
    $region24: #{tpu_custom_call.1} parent=5 // pred_fallthru
      _
    %p155 = scmp.le.s32.totalorder 1, %s9
    %p156 = scmp.lt.s32.totalorder %s9, 3
    %p157 = pnand %p155, %p156
    %p158 = pneg %p157
    // Predicated region
    $region29: #{tpu_custom_call.1} parent=5 // pred_check
      _
    $region30: #{tpu_custom_call.1} parent=5 // pred_check_branch
      %160 = sbr.rel (%p157) target = $region32
    $region31: #{tpu_custom_call.1} parent=5 // pred_region
      %s161 = ssub.s32 %s9, 1
      %s162 = smul.u32 %s18, 2
      %s163 = sadd.s32 %s162, %s19
      %p164 = scmp.lt.s32.totalorder %s163, 1
      %s165 = scalar_select %p164, %s163, 1
      %s166 = smul.addr %s165, 8
      %s167 = scalar_lea.vmem %s0, %s166
      %p168 = pneg %p51
      %p169 = pneg %p48
      %p170 = pneg %p72
      %p171 = pneg %p69
      %p172 = pneg %p93
      %p173 = pneg %p90
      %p174 = pneg %p119
      %p175 = pneg %p116
      %p176 = scmp.lt.s32.totalorder %s18, 0
      %s177 = scalar_select %p176, %s18, 0
      %s178 = smul.addr %s177, 8
      %s179 = smul.addr %s178, 8
      %s180 = scalar_lea.vmem %s3, %s179
      %s181 = smul.u32 %s18, 2
      %s182 = sadd.s32 %s181, %s19
      %p183 = scmp.lt.s32.totalorder %s182, 1
      %s184 = scalar_select %p183, %s182, 1
      %s185 = smul.addr %s184, 8
      %s186 = scalar_lea.vmem %s0, %s185
      %s187 = smul.u32 %s18, 2
      %s188 = sadd.s32 %s187, %s19
      %p189 = scmp.lt.s32.totalorder %s18, 0
      %s190 = scalar_select %p189, %s18, 0
      %s191 = smul.addr %s190, 8
      %s192 = smul.addr %s191, 8
      %s193 = scalar_lea.vmem %s3, %s192
      %p194 = scmp.eq.s32.totalorder %s19, 0
      // Predicated region
      $region33: #{tpu_custom_call.1} parent=31 // pred_check
        %p195 = pneg %p194
      $region34: #{tpu_custom_call.1} parent=31 // pred_check_branch
        %197 = sbr.rel (%p195) target = $region36
      $region35: #{tpu_custom_call.1} parent=31 // pred_region
        %vm198 = vcmask 15360
        %199 = vst.msk [vmem:[%s193] sm:$0xff] %vm198, 0.0
        %200 = vst.msk [vmem:[%s193 + $0x8] sm:$0xff] %vm198, 0.0
        %201 = vst.msk [vmem:[%s193 + $0x10] sm:$0xff] %vm198, 0.0
        %202 = vst.msk [vmem:[%s193 + $0x18] sm:$0xff] %vm198, 0.0
        %203 = vst.msk [vmem:[%s193 + $0x20] sm:$0xff] %vm198, 0.0
        %204 = vst.msk [vmem:[%s193 + $0x28] sm:$0xff] %vm198, 0.0
        %205 = vst.msk [vmem:[%s193 + $0x30] sm:$0xff] %vm198, 0.0
        %206 = vst.msk [vmem:[%s193 + $0x38] sm:$0xff] %vm198, 0.0
      $region36: #{tpu_custom_call.1} parent=31 // pred_fallthru
        _
      %v207 = vld [vmem:[%s186] sm:$0xff]
      %v208 = vld [vmem:[%s1] sm:$0xff]
      %v209 = vld [vmem:[%s1 + $0x8] sm:$0xff]
      %v210 = vld [vmem:[%s1 + $0x10] sm:$0xff]
      %v211 = vld [vmem:[%s1 + $0x18] sm:$0xff]
      %v212 = vld [vmem:[%s1 + $0x20] sm:$0xff]
      %v213 = vld [vmem:[%s1 + $0x28] sm:$0xff]
      %v214 = vld [vmem:[%s1 + $0x30] sm:$0xff]
      %v215 = vld [vmem:[%s1 + $0x38] sm:$0xff]
      %v216 = vld [vmem:[%s2] sm:$0xff]
      %v217 = vld [vmem:[%s2 + $0x8] sm:$0xff]
      %v218 = vld [vmem:[%s2 + $0x10] sm:$0xff]
      %v219 = vld [vmem:[%s2 + $0x18] sm:$0xff]
      %v220 = vld [vmem:[%s2 + $0x20] sm:$0xff]
      %v221 = vld [vmem:[%s2 + $0x28] sm:$0xff]
      %v222 = vld [vmem:[%s2 + $0x30] sm:$0xff]
      %v223 = vld [vmem:[%s2 + $0x38] sm:$0xff]
      %225 = vset.pattern.permute.xlu0 0
      %226 = vperm.xlu0 %225, %v216
      %v227 = vpop.permute.xlu0 %226
      %230 = vset.pattern.permute.xlu0 0
      %231 = vperm.xlu0 %230, %v217
      %v232 = vpop.permute.xlu0 %231
      %235 = vset.pattern.permute.xlu0 0
      %236 = vperm.xlu0 %235, %v218
      %v237 = vpop.permute.xlu0 %236
      %240 = vset.pattern.permute.xlu0 0
      %241 = vperm.xlu0 %240, %v219
      %v242 = vpop.permute.xlu0 %241
      %245 = vset.pattern.permute.xlu0 0
      %246 = vperm.xlu0 %245, %v220
      %v247 = vpop.permute.xlu0 %246
      %250 = vset.pattern.permute.xlu0 0
      %251 = vperm.xlu0 %250, %v221
      %v252 = vpop.permute.xlu0 %251
      %255 = vset.pattern.permute.xlu0 0
      %256 = vperm.xlu0 %255, %v222
      %v257 = vpop.permute.xlu0 %256
      %260 = vset.pattern.permute.xlu0 0
      %261 = vperm.xlu0 %260, %v223
      %v262 = vpop.permute.xlu0 %261
      %vm264 = vcmask 64512
      %v266 = vsel %vm264, %v208, 0
      %v269 = vsel %vm264, %v209, 0
      %v272 = vsel %vm264, %v210, 0
      %v275 = vsel %vm264, %v211, 0
      %v278 = vsel %vm264, %v212, 0
      %v281 = vsel %vm264, %v213, 0
      %v284 = vsel %vm264, %v214, 0
      %v287 = vsel %vm264, %v215, 0
      %289 = vmatprep.subr.mxu0 0.0
      %290 = vmatpush1.msra.mxu0 0.0
      %291 = vmatprep.subr.mxu0 0.0
      %292 = vmatpush1.msra.mxu0 0.0
      %293 = vmatprep.subr.mxu0 0.0
      %294 = vmatpush1.msra.mxu0 0.0
      %295 = vmatprep.subr.mxu0 0.0
      %296 = vmatpush1.msra.mxu0 0.0
      %297 = vmatprep.subr.mxu0 0.0
      %298 = vmatpush1.msra.mxu0 0.0
      %299 = vmatprep.subr.mxu0 0.0
      %300 = vmatpush1.msra.mxu0 0.0
      %301 = vmatprep.subr.mxu0 0.0
      %302 = vmatpush1.msra.mxu0 0.0
      %303 = vmatprep.subr.mxu0 0.0
      %304 = vmatpush1.msra.mxu0 0.0
      %305 = vmatprep.subr.mxu0 0.0
      %306 = vmatpush1.msra.mxu0 0.0
      %307 = vmatprep.subr.mxu0 0.0
      %308 = vmatpush1.msra.mxu0 0.0
      %309 = vmatprep.subr.mxu0 0.0
      %310 = vmatpush1.msra.mxu0 0.0
      %311 = vmatprep.subr.mxu0 0.0
      %312 = vmatpush1.msra.mxu0 0.0
      %313 = vmatprep.subr.mxu0 0.0
      %314 = vmatpush1.msra.mxu0 0.0
      %315 = vmatprep.subr.mxu0 0.0
      %316 = vmatpush1.msra.mxu0 0.0
      %317 = vmatprep.subr.mxu0 0.0
      %318 = vmatpush1.msra.mxu0 0.0
      %319 = vmatprep.subr.mxu0 0.0
      %320 = vmatpush1.msra.mxu0 %v207
      %321 = vmatprep.subr.mxu0 0.0
      %322 = vmatpush2.msra.mxu0 0.0
      %323 = vmatprep.subr.mxu0 0.0
      %324 = vmatpush2.msra.mxu0 0.0
      %325 = vmatprep.subr.mxu0 0.0
      %326 = vmatpush2.msra.mxu0 0.0
      %327 = vmatprep.subr.mxu0 0.0
      %328 = vmatpush2.msra.mxu0 0.0
      %329 = vmatprep.subr.mxu0 0.0
      %330 = vmatpush2.msra.mxu0 0.0
      %331 = vmatprep.subr.mxu0 0.0
      %332 = vmatpush2.msra.mxu0 0.0
      %333 = vmatprep.subr.mxu0 0.0
      %334 = vmatpush2.msra.mxu0 0.0
      %335 = vmatprep.subr.mxu0 0.0
      %336 = vmatpush2.msra.mxu0 0.0
      %337 = vmatprep.subr.mxu0 0.0
      %338 = vmatpush2.msra.mxu0 0.0
      %339 = vmatprep.subr.mxu0 0.0
      %340 = vmatpush2.msra.mxu0 0.0
      %341 = vmatprep.subr.mxu0 0.0
      %342 = vmatpush2.msra.mxu0 0.0
      %343 = vmatprep.subr.mxu0 0.0
      %344 = vmatpush2.msra.mxu0 0.0
      %345 = vmatprep.subr.mxu0 0.0
      %346 = vmatpush2.msra.mxu0 0.0
      %347 = vmatprep.subr.mxu0 0.0
      %348 = vmatpush2.msra.mxu0 0.0
      %349 = vmatprep.subr.mxu0 0.0
      %350 = vmatpush2.msra.mxu0 0.0
      %351 = vmatprep.subr.mxu0 0.0
      %352 = vmatpush2.msra.mxu0 0.0
      %353 = vmatprep.mubr.f32.mxu0 0.0
      %354 = vmatmul.mubr.f32.gmra.mxu0 %v266
      %v355 = vpop.f32.mrf.mxu0
      %v356 = vadd.f32 %v227, %v355
      %v357 = vpop.f32.mrf.mxu0
      %358 = vmatprep.mubr.f32.mxu0 0.0
      %359 = vmatmul.mubr.f32.gmra.mxu0 %v269
      %v360 = vpop.f32.mrf.mxu0
      %v361 = vadd.f32 %v232, %v360
      %v362 = vpop.f32.mrf.mxu0
      %363 = vmatprep.mubr.f32.mxu0 0.0
      %364 = vmatmul.mubr.f32.gmra.mxu0 %v272
      %v365 = vpop.f32.mrf.mxu0
      %v366 = vadd.f32 %v237, %v365
      %v367 = vpop.f32.mrf.mxu0
      %368 = vmatprep.mubr.f32.mxu0 0.0
      %369 = vmatmul.mubr.f32.gmra.mxu0 %v275
      %v370 = vpop.f32.mrf.mxu0
      %v371 = vadd.f32 %v242, %v370
      %v372 = vpop.f32.mrf.mxu0
      %373 = vmatprep.mubr.f32.mxu0 0.0
      %374 = vmatmul.mubr.f32.gmra.mxu0 %v278
      %v375 = vpop.f32.mrf.mxu0
      %v376 = vadd.f32 %v247, %v375
      %v377 = vpop.f32.mrf.mxu0
      %378 = vmatprep.mubr.f32.mxu0 0.0
      %379 = vmatmul.mubr.f32.gmra.mxu0 %v281
      %v380 = vpop.f32.mrf.mxu0
      %v381 = vadd.f32 %v252, %v380
      %v382 = vpop.f32.mrf.mxu0
      %383 = vmatprep.mubr.f32.mxu0 0.0
      %384 = vmatmul.mubr.f32.gmra.mxu0 %v284
      %v385 = vpop.f32.mrf.mxu0
      %v386 = vadd.f32 %v257, %v385
      %v387 = vpop.f32.mrf.mxu0
      %388 = vmatprep.mubr.f32.mxu0 0.0
      %389 = vmatmul.mubr.f32.gmra.mxu0 %v287
      %v390 = vpop.f32.mrf.mxu0
      %v391 = vadd.f32 %v262, %v390
      %v392 = vpop.f32.mrf.mxu0
      %393 = vdwg.mxu0
      %v394 = vmax.f32 %v356, 0.0
      %v395 = vmax.f32 %v361, 0.0
      %v396 = vmax.f32 %v366, 0.0
      %v397 = vmax.f32 %v371, 0.0
      %v398 = vmax.f32 %v376, 0.0
      %v399 = vmax.f32 %v381, 0.0
      %v400 = vmax.f32 %v386, 0.0
      %v401 = vmax.f32 %v391, 0.0
      %s402 = smul.u32 %s18, 2
      %s403 = sadd.s32 %s402, %s19
      %s404 = smul.u32 %s403, 128
      %v405 = vlaneseq
      %v406 = vand.u32 %v405, 127
      %v407 = vstv %s404
      %v408 = vadd.s32 %v407, %v406
      %vm409 = vcmp.lt.s32.totalorder %v408, 200
      %v410 = vsel %vm409, 1, 0
      %vm411 = vcmp.eq.s32.totalorder %v410, 1
      %v412 = vsel %vm411, %v394, 0.0
      %v413 = vsel %vm411, %v395, 0.0
      %v414 = vsel %vm411, %v396, 0.0
      %v415 = vsel %vm411, %v397, 0.0
      %v416 = vsel %vm411, %v398, 0.0
      %v417 = vsel %vm411, %v399, 0.0
      %v418 = vsel %vm411, %v400, 0.0
      %v419 = vsel %vm411, %v401, 0.0
      %v420 = vld [vmem:[%s193] sm:$0xff]
      %v421 = vld [vmem:[%s193 + $0x8] sm:$0xff]
      %v422 = vld [vmem:[%s193 + $0x10] sm:$0xff]
      %v423 = vld [vmem:[%s193 + $0x18] sm:$0xff]
      %v424 = vld [vmem:[%s193 + $0x20] sm:$0xff]
      %v425 = vld [vmem:[%s193 + $0x28] sm:$0xff]
      %v426 = vld [vmem:[%s193 + $0x30] sm:$0xff]
      %v427 = vld [vmem:[%s193 + $0x38] sm:$0xff]
      %428 = vadd.xlane.f32.xlu0 %v412
      %v429 = vpop.xlane.xlu0 %428
      %430 = vadd.xlane.f32.xlu0 %v413
      %v431 = vpop.xlane.xlu0 %430
      %432 = vadd.xlane.f32.xlu0 %v414
      %v433 = vpop.xlane.xlu0 %432
      %434 = vadd.xlane.f32.xlu0 %v415
      %v435 = vpop.xlane.xlu0 %434
      %436 = vadd.xlane.f32.xlu0 %v416
      %v437 = vpop.xlane.xlu0 %436
      %438 = vadd.xlane.f32.xlu0 %v417
      %v439 = vpop.xlane.xlu0 %438
      %440 = vadd.xlane.f32.xlu0 %v418
      %v441 = vpop.xlane.xlu0 %440
      %442 = vadd.xlane.f32.xlu0 %v419
      %v443 = vpop.xlane.xlu0 %442
      %v444 = vadd.f32 %v420, %v429
      %v445 = vadd.f32 %v421, %v431
      %v446 = vadd.f32 %v422, %v433
      %v447 = vadd.f32 %v423, %v435
      %v448 = vadd.f32 %v424, %v437
      %v449 = vadd.f32 %v425, %v439
      %v450 = vadd.f32 %v426, %v441
      %v451 = vadd.f32 %v427, %v443
      %vm452 = vcmask 7168
      %453 = vst.msk [vmem:[%s193] sm:$0xff] %vm452, %v444
      %454 = vst.msk [vmem:[%s193 + $0x8] sm:$0xff] %vm452, %v445
      %455 = vst.msk [vmem:[%s193 + $0x10] sm:$0xff] %vm452, %v446
      %456 = vst.msk [vmem:[%s193 + $0x18] sm:$0xff] %vm452, %v447
      %457 = vst.msk [vmem:[%s193 + $0x20] sm:$0xff] %vm452, %v448
      %458 = vst.msk [vmem:[%s193 + $0x28] sm:$0xff] %vm452, %v449
      %459 = vst.msk [vmem:[%s193 + $0x30] sm:$0xff] %vm452, %v450
      %460 = vst.msk [vmem:[%s193 + $0x38] sm:$0xff] %vm452, %v451
      %v461 = vld [vmem:[%s193] sm:$0xff]
      %v462 = vld [vmem:[%s193 + $0x8] sm:$0xff]
      %v463 = vld [vmem:[%s193 + $0x10] sm:$0xff]
      %v464 = vld [vmem:[%s193 + $0x18] sm:$0xff]
      %v465 = vld [vmem:[%s193 + $0x20] sm:$0xff]
      %v466 = vld [vmem:[%s193 + $0x28] sm:$0xff]
      %v467 = vld [vmem:[%s193 + $0x30] sm:$0xff]
      %v468 = vld [vmem:[%s193 + $0x38] sm:$0xff]
      %v469 = vmul.f32 %v412, %v412
      %v470 = vmul.f32 %v413, %v413
      %v471 = vmul.f32 %v414, %v414
      %v472 = vmul.f32 %v415, %v415
      %v473 = vmul.f32 %v416, %v416
      %v474 = vmul.f32 %v417, %v417
      %v475 = vmul.f32 %v418, %v418
      %v476 = vmul.f32 %v419, %v419
      %477 = vadd.xlane.f32.xlu0 %v469
      %v478 = vpop.xlane.xlu0 %477
      %479 = vadd.xlane.f32.xlu0 %v470
      %v480 = vpop.xlane.xlu0 %479
      %481 = vadd.xlane.f32.xlu0 %v471
      %v482 = vpop.xlane.xlu0 %481
      %483 = vadd.xlane.f32.xlu0 %v472
      %v484 = vpop.xlane.xlu0 %483
      %485 = vadd.xlane.f32.xlu0 %v473
      %v486 = vpop.xlane.xlu0 %485
      %487 = vadd.xlane.f32.xlu0 %v474
      %v488 = vpop.xlane.xlu0 %487
      %489 = vadd.xlane.f32.xlu0 %v475
      %v490 = vpop.xlane.xlu0 %489
      %491 = vadd.xlane.f32.xlu0 %v476
      %v492 = vpop.xlane.xlu0 %491
      %v493 = vadd.f32 %v461, %v478
      %v494 = vadd.f32 %v462, %v480
      %v495 = vadd.f32 %v463, %v482
      %v496 = vadd.f32 %v464, %v484
      %v497 = vadd.f32 %v465, %v486
      %v498 = vadd.f32 %v466, %v488
      %v499 = vadd.f32 %v467, %v490
      %v500 = vadd.f32 %v468, %v492
      %vm501 = vcmask 15368
      %502 = vst.msk [vmem:[%s193] sm:$0xff] %vm501, %v493
      %503 = vst.msk [vmem:[%s193 + $0x8] sm:$0xff] %vm501, %v494
      %504 = vst.msk [vmem:[%s193 + $0x10] sm:$0xff] %vm501, %v495
      %505 = vst.msk [vmem:[%s193 + $0x18] sm:$0xff] %vm501, %v496
      %506 = vst.msk [vmem:[%s193 + $0x20] sm:$0xff] %vm501, %v497
      %507 = vst.msk [vmem:[%s193 + $0x28] sm:$0xff] %vm501, %v498
      %508 = vst.msk [vmem:[%s193 + $0x30] sm:$0xff] %vm501, %v499
      %509 = vst.msk [vmem:[%s193 + $0x38] sm:$0xff] %vm501, %v500
      %p510 = scmp.lt.s32.totalorder %s18, 0
      %s511 = scalar_select %p510, %s18, 0
      %s512 = smul.addr %s511, 8
      %s513 = smul.addr %s512, 8
      %s514 = scalar_lea.vmem %s3, %s513
      // Predicated region
      $region37: #{tpu_custom_call.1} parent=31 // pred_check
        %p515 = pneg %p116
      $region38: #{tpu_custom_call.1} parent=31 // pred_check_branch
        %517 = sbr.rel (%p515) target = $region40
      $region39: #{tpu_custom_call.1} parent=31 // pred_region
        _
      $region40: #{tpu_custom_call.1} parent=31 // pred_fallthru
        _
      // Predicated region
      $region41: #{tpu_custom_call.1} parent=31 // pred_check
        %p518 = pneg %p116
      $region42: #{tpu_custom_call.1} parent=31 // pred_check_branch
        %520 = sbr.rel (%p518) target = $region44
      $region43: #{tpu_custom_call.1} parent=31 // pred_region
        %p521 = scmp.lt.s32.totalorder %s18, 0
        %s522 = scalar_select %p521, %s18, 0
        %s523 = smul.addr %s522, 8
        %s524 = smul.addr %s523, 8
        %s525 = scalar_lea.vmem %s3, %s524
      $region44: #{tpu_custom_call.1} parent=31 // pred_fallthru
        _
    $region32: #{tpu_custom_call.1} parent=5 // pred_fallthru
      _
    %p526 = scmp.le.s32.totalorder 2, %s9
    // Predicated region
    $region45: #{tpu_custom_call.1} parent=5 // pred_check
      %p527 = pneg %p526
    $region46: #{tpu_custom_call.1} parent=5 // pred_check_branch
      %529 = sbr.rel (%p527) target = $region48
    $region47: #{tpu_custom_call.1} parent=5 // pred_region
      %s530 = ssub.s32 %s9, 2
    $region48: #{tpu_custom_call.1} parent=5 // pred_fallthru
      _
  $region6: #{tpu_custom_call.1} parent=0 // loop_footer
    %s13 = sadd.s32 1, %s9
  $region7: #{tpu_custom_call.1} parent=0 // loop_footer_branch
    %8 = sbr.rel target = $region3
  $region8: #{tpu_custom_call.1} parent=0 // loop_exit
    _

</llo_original>
